<compile_context>
chip_gen: v5e
topology: v5e:2x2
jax: 0.10.0
libtpu: 0.0.40
codegen_flags: <defaults>
</compile_context>

<pallas_src>
import functools

import jax
import jax.numpy as jnp
from jax.experimental import pallas as pl
from jax.experimental.pallas import tpu as pltpu

HIDDEN = 500


def _round_up(n, m):
    return ((n + m - 1) // m) * m


def _mlp_kernel(x_ref, w1_ref, b1_ref, w2_ref, b2_ref, w3_ref, b3_ref, o_ref):
    # Layer 1: x @ W1 + b1, ReLU  (bf16 operands on the MXU, f32 accumulate)
    x = x_ref[...]
    h1 = jnp.dot(x.astype(jnp.bfloat16), w1_ref[...],
                 preferred_element_type=jnp.float32)
    h1 = jnp.maximum(h1 + b1_ref[...], 0.0)
    # Layer 2: h1 @ W2 + b2, ReLU
    h2 = jnp.dot(h1.astype(jnp.bfloat16), w2_ref[...],
                 preferred_element_type=jnp.float32)
    h2 = jnp.maximum(h2 + b2_ref[...], 0.0)
    # Output layer: h2 @ W3 + b3 (no activation)
    out = jnp.dot(h2.astype(jnp.bfloat16), w3_ref[...],
                  preferred_element_type=jnp.float32)
    o_ref[...] = (out + b3_ref[...]).astype(o_ref.dtype)


def network_forward(x, params, *, batch_tile=256):
    """Fused 3-layer MLP forward pass as a single batch-tiled Pallas kernel.

    x: (batch, input_dim) float32
    params: dict with w1 (input_dim, 500), b1 (1, 500),
                      w2 (500, 500),       b2 (1, 500),
                      w3 (500, output_dim), b3 (1, output_dim)
    """
    w1, b1 = params["w1"], params["b1"]
    w2, b2 = params["w2"], params["b2"]
    w3, b3 = params["w3"], params["b3"]

    B, D = x.shape
    H = w1.shape[1]
    O = w3.shape[1]

    # Lane-/sublane-aligned padded dims. Zero padding keeps the math exact:
    # padded hidden columns have zero weights and zero bias -> ReLU(0)=0 -> they
    # contribute nothing downstream; padded output columns are sliced off.
    Dp = _round_up(D, 128)
    Hp = _round_up(H, 128)          # 500 -> 512
    Op = _round_up(O, 128)
    TB = batch_tile if B >= batch_tile else _round_up(B, 8)
    Bp = _round_up(B, TB)

    f32, bf16 = jnp.float32, jnp.bfloat16

    # NOTE: in a real training/inference loop the padded bf16 weights would be
    # prepared once outside the hot path; done inline here for self-containment.
    xp = jnp.zeros((Bp, Dp), f32).at[:B, :D].set(x.astype(f32))
    w1p = jnp.zeros((Dp, Hp), bf16).at[:D, :H].set(w1.astype(bf16))
    b1p = jnp.zeros((1, Hp), f32).at[:, :H].set(b1.reshape(1, H).astype(f32))
    w2p = jnp.zeros((Hp, Hp), bf16).at[:H, :H].set(w2.astype(bf16))
    b2p = jnp.zeros((1, Hp), f32).at[:, :H].set(b2.reshape(1, H).astype(f32))
    w3p = jnp.zeros((Hp, Op), bf16).at[:H, :O].set(w3.astype(bf16))
    b3p = jnp.zeros((1, Op), f32).at[:, :O].set(b3.reshape(1, O).astype(f32))

    grid = (Bp // TB,)

    # Weights / biases: same block for every grid step -> VMEM-resident.
    resident = lambda shape: pl.BlockSpec(shape, lambda i: (0, 0))

    flops = 2 * Bp * (Dp * Hp + Hp * Hp + Hp * Op)
    bytes_accessed = (
        xp.size * 4
        + (w1p.size + w2p.size + w3p.size) * 2
        + (b1p.size + b2p.size + b3p.size) * 4
        + Bp * Op * 4
    )

    out_p = pl.pallas_call(
        _mlp_kernel,
        out_shape=jax.ShapeDtypeStruct((Bp, Op), f32),
        grid=grid,
        in_specs=[
            pl.BlockSpec((TB, Dp), lambda i: (i, 0)),   # x: tiled over batch
            resident((Dp, Hp)), resident((1, Hp)),       # W1, b1
            resident((Hp, Hp)), resident((1, Hp)),       # W2, b2
            resident((Hp, Op)), resident((1, Op)),       # W3, b3
        ],
        out_specs=pl.BlockSpec((TB, Op), lambda i: (i, 0)),
        compiler_params=pltpu.CompilerParams(
            dimension_semantics=("parallel",),
        ),
        cost_estimate=pl.CostEstimate(
            flops=flops, transcendentals=0, bytes_accessed=bytes_accessed),
    )(xp, w1p, b1p, w2p, b2p, w3p, b3p)

    return out_p[:B, :O]


def init_params(key, input_dim, output_dim):
    """Deterministic init mirroring torch.nn.Linear's U(-1/sqrt(fan_in), +1/sqrt(fan_in))."""
    ks = jax.random.split(key, 6)

    def linear(kw, kb, fan_in, fan_out):
        bound = 1.0 / jnp.sqrt(float(fan_in))
        w = jax.random.uniform(kw, (fan_in, fan_out), jnp.float32, -bound, bound)
        b = jax.random.uniform(kb, (1, fan_out), jnp.float32, -bound, bound)
        return w, b

    w1, b1 = linear(ks[0], ks[1], input_dim, HIDDEN)
    w2, b2 = linear(ks[2], ks[3], HIDDEN, HIDDEN)
    w3, b3 = linear(ks[4], ks[5], HIDDEN, output_dim)
    return {"w1": w1, "b1": b1, "w2": w2, "b2": b2, "w3": w3, "b3": b3}


def _reference_forward(x, p):
    """JAX reference with the same bf16-weight / f32-accumulate dtype pattern."""
    bf16 = jnp.bfloat16

    def lin(a, w, b):
        return jnp.dot(a.astype(bf16), w.astype(bf16),
                       preferred_element_type=jnp.float32) + b

    h1 = jnp.maximum(lin(x, p["w1"], p["b1"]), 0.0)
    h2 = jnp.maximum(lin(h1, p["w2"], p["b2"]), 0.0)
    return lin(h2, p["w3"], p["b3"])


if __name__ == "__main__":
    key = jax.random.PRNGKey(0)
    k_in, k_in2, k_param = jax.random.split(key, 3)

    batch, input_dim, output_dim = 2, 8, 4
    params = init_params(k_param, input_dim, output_dim)

    # Small case (single batch tile, padded to 8 sublanes).
    x = jax.random.normal(k_in, (batch, input_dim), jnp.float32)
    out = jax.block_until_ready(network_forward(x, params))
    ref = _reference_forward(x, params)
    assert out.shape == (batch, output_dim)
    assert jnp.allclose(out, ref, atol=2e-2, rtol=2e-2), "mismatch vs JAX reference (small)"

    # Larger case exercising the multi-tile batch grid (grid=(3,), TB=256).
    big_batch = 600
    xb = jax.random.normal(k_in2, (big_batch, input_dim), jnp.float32)
    outb = jax.block_until_ready(network_forward(xb, params))
    refb = _reference_forward(xb, params)
    assert outb.shape == (big_batch, output_dim)
    assert jnp.allclose(outb, refb, atol=2e-2, rtol=2e-2), "mismatch vs JAX reference (tiled)"

    print("KERNEL_OK")
</pallas_src>

<mosaic_0001>
module attributes {stable_mosaic.version = 11 : i64} {
  func.func @_mlp_kernel(%arg0: i32, %arg1: memref<8x128xf32, #tpu.memory_space<vmem>>, %arg2: memref<128x512xbf16, #tpu.memory_space<vmem>>, %arg3: memref<1x512xf32, #tpu.memory_space<vmem>>, %arg4: memref<512x512xbf16, #tpu.memory_space<vmem>>, %arg5: memref<1x512xf32, #tpu.memory_space<vmem>>, %arg6: memref<512x128xbf16, #tpu.memory_space<vmem>>, %arg7: memref<1x128xf32, #tpu.memory_space<vmem>>, %arg8: memref<8x128xf32, #tpu.memory_space<vmem>>) attributes {dimension_semantics = [#tpu.dimension_semantics<parallel>], iteration_bounds = array<i64: 1>, scalar_prefetch = 0 : i64, scratch_operands = 0 : i64, tpu.core_type = #tpu.core_type<tc>, window_params = [{transform_indices = @transform_0, window_bounds = array<i64: 8, 128>}, {pipeline_mode = #tpu.pipeline_mode<synchronous>, transform_indices = @transform_1, window_bounds = array<i64: 128, 512>}, {pipeline_mode = #tpu.pipeline_mode<synchronous>, transform_indices = @transform_2, window_bounds = array<i64: 1, 512>}, {pipeline_mode = #tpu.pipeline_mode<synchronous>, transform_indices = @transform_3, window_bounds = array<i64: 512, 512>}, {pipeline_mode = #tpu.pipeline_mode<synchronous>, transform_indices = @transform_4, window_bounds = array<i64: 1, 512>}, {pipeline_mode = #tpu.pipeline_mode<synchronous>, transform_indices = @transform_5, window_bounds = array<i64: 512, 128>}, {pipeline_mode = #tpu.pipeline_mode<synchronous>, transform_indices = @transform_6, window_bounds = array<i64: 1, 128>}, {transform_indices = @transform_7, window_bounds = array<i64: 8, 128>}]} {
    %c0 = arith.constant 0 : index
    %c0_0 = arith.constant 0 : index
    %0 = vector.load %arg1[%c0, %c0_0] : memref<8x128xf32, #tpu.memory_space<vmem>>, vector<8x128xf32>
    %1 = arith.truncf %0 : vector<8x128xf32> to vector<8x128xbf16>
    %c0_1 = arith.constant 0 : index
    %c0_2 = arith.constant 0 : index
    %2 = vector.load %arg2[%c0_1, %c0_2] : memref<128x512xbf16, #tpu.memory_space<vmem>>, vector<128x512xbf16>
    %cst = arith.constant dense<0.000000e+00> : vector<8x512xf32>
    %3 = tpu.matmul %1, %2, %cst {dimension_numbers = #tpu.dot_dimension_numbers<[1], [0], [0], [1], [0, 0, 1, 1], [], []>} : vector<8x128xbf16>, vector<128x512xbf16>, vector<8x512xf32> -> vector<8x512xf32>
    %c0_3 = arith.constant 0 : index
    %c0_4 = arith.constant 0 : index
    %4 = vector.load %arg3[%c0_3, %c0_4] : memref<1x512xf32, #tpu.memory_space<vmem>>, vector<1x512xf32>
    %5 = vector.broadcast %4 : vector<1x512xf32> to vector<8x512xf32>
    %6 = arith.addf %3, %5 : vector<8x512xf32>
    %cst_5 = arith.constant 0.000000e+00 : f32
    %7 = vector.broadcast %cst_5 : f32 to vector<8x512xf32>
    %8 = arith.maximumf %6, %7 : vector<8x512xf32>
    %9 = arith.truncf %8 : vector<8x512xf32> to vector<8x512xbf16>
    %c0_6 = arith.constant 0 : index
    %c0_7 = arith.constant 0 : index
    %10 = vector.load %arg4[%c0_6, %c0_7] : memref<512x512xbf16, #tpu.memory_space<vmem>>, vector<512x512xbf16>
    %cst_8 = arith.constant dense<0.000000e+00> : vector<8x512xf32>
    %11 = tpu.matmul %9, %10, %cst_8 {dimension_numbers = #tpu.dot_dimension_numbers<[1], [0], [0], [1], [0, 0, 1, 1], [], []>} : vector<8x512xbf16>, vector<512x512xbf16>, vector<8x512xf32> -> vector<8x512xf32>
    %c0_9 = arith.constant 0 : index
    %c0_10 = arith.constant 0 : index
    %12 = vector.load %arg5[%c0_9, %c0_10] : memref<1x512xf32, #tpu.memory_space<vmem>>, vector<1x512xf32>
    %13 = vector.broadcast %12 : vector<1x512xf32> to vector<8x512xf32>
    %14 = arith.addf %11, %13 : vector<8x512xf32>
    %cst_11 = arith.constant 0.000000e+00 : f32
    %15 = vector.broadcast %cst_11 : f32 to vector<8x512xf32>
    %16 = arith.maximumf %14, %15 : vector<8x512xf32>
    %17 = arith.truncf %16 : vector<8x512xf32> to vector<8x512xbf16>
    %c0_12 = arith.constant 0 : index
    %c0_13 = arith.constant 0 : index
    %18 = vector.load %arg6[%c0_12, %c0_13] : memref<512x128xbf16, #tpu.memory_space<vmem>>, vector<512x128xbf16>
    %cst_14 = arith.constant dense<0.000000e+00> : vector<8x128xf32>
    %19 = tpu.matmul %17, %18, %cst_14 {dimension_numbers = #tpu.dot_dimension_numbers<[1], [0], [0], [1], [0, 0, 1, 1], [], []>} : vector<8x512xbf16>, vector<512x128xbf16>, vector<8x128xf32> -> vector<8x128xf32>
    %c0_15 = arith.constant 0 : index
    %c0_16 = arith.constant 0 : index
    %20 = vector.load %arg7[%c0_15, %c0_16] : memref<1x128xf32, #tpu.memory_space<vmem>>, vector<1x128xf32>
    %21 = vector.broadcast %20 : vector<1x128xf32> to vector<8x128xf32>
    %22 = arith.addf %19, %21 : vector<8x128xf32>
    %c0_17 = arith.constant 0 : index
    %c0_18 = arith.constant 0 : index
    %23 = vector.load %arg8[%c0_17, %c0_18] : memref<8x128xf32, #tpu.memory_space<vmem>>, vector<8x128xf32>
    tpu.vector_store %arg8[%c0_17, %c0_18], %22 {strides = array<i32>} : memref<8x128xf32, #tpu.memory_space<vmem>>, vector<8x128xf32>,
    return
  }
  func.func @transform_0(%arg0: i32) -> (i32, i32) {
    %c0_i32 = arith.constant 0 : i32
    %c0_i32_0 = arith.constant 0 : i32
    return %arg0, %c0_i32 : i32, i32
  }
  func.func @transform_1(%arg0: i32) -> (i32, i32) {
    %c0_i32 = arith.constant 0 : i32
    %c0_i32_0 = arith.constant 0 : i32
    %c0_i32_1 = arith.constant 0 : i32
    return %c0_i32, %c0_i32_0 : i32, i32
  }
  func.func @transform_2(%arg0: i32) -> (i32, i32) {
    %c0_i32 = arith.constant 0 : i32
    %c0_i32_0 = arith.constant 0 : i32
    %c0_i32_1 = arith.constant 0 : i32
    return %c0_i32, %c0_i32_0 : i32, i32
  }
  func.func @transform_3(%arg0: i32) -> (i32, i32) {
    %c0_i32 = arith.constant 0 : i32
    %c0_i32_0 = arith.constant 0 : i32
    %c0_i32_1 = arith.constant 0 : i32
    return %c0_i32, %c0_i32_0 : i32, i32
  }
  func.func @transform_4(%arg0: i32) -> (i32, i32) {
    %c0_i32 = arith.constant 0 : i32
    %c0_i32_0 = arith.constant 0 : i32
    %c0_i32_1 = arith.constant 0 : i32
    return %c0_i32, %c0_i32_0 : i32, i32
  }
  func.func @transform_5(%arg0: i32) -> (i32, i32) {
    %c0_i32 = arith.constant 0 : i32
    %c0_i32_0 = arith.constant 0 : i32
    %c0_i32_1 = arith.constant 0 : i32
    return %c0_i32, %c0_i32_0 : i32, i32
  }
  func.func @transform_6(%arg0: i32) -> (i32, i32) {
    %c0_i32 = arith.constant 0 : i32
    %c0_i32_0 = arith.constant 0 : i32
    %c0_i32_1 = arith.constant 0 : i32
    return %c0_i32, %c0_i32_0 : i32, i32
  }
  func.func @transform_7(%arg0: i32) -> (i32, i32) {
    %c0_i32 = arith.constant 0 : i32
    %c0_i32_0 = arith.constant 0 : i32
    return %arg0, %c0_i32 : i32, i32
  }
}

</mosaic_0001>

<llo_original>
// kernel: tpu_custom_call.1
$region0: #{tpu_custom_call.1}
  #allocation0 [shape = 'u32[]', space=smem, size = 0x4, offset = 0x4, fixed_abs, tag = 'smem constant byte address 0x4 - core index']
  #allocation1 [shape = 'u32[72,128]{1,0:T(1,128)}', space=vmem, size = 0x9000, scoped, tag = 'internal scratch']
  %s0 = inlined_call_operand.hbm [shape: f32[8,128], index: 0, kind: input, shape index: {}]
  %s1 = inlined_call_operand.hbm [shape: bf16[128,512], index: 1, kind: input, shape index: {}]
  %s2 = inlined_call_operand.hbm [shape: f32[1,512], index: 2, kind: input, shape index: {}]
  %s3 = inlined_call_operand.hbm [shape: bf16[512,512], index: 3, kind: input, shape index: {}]
  %s4 = inlined_call_operand.hbm [shape: f32[1,512], index: 4, kind: input, shape index: {}]
  %s5 = inlined_call_operand.hbm [shape: bf16[512,128], index: 5, kind: input, shape index: {}]
  %s6 = inlined_call_operand.vmem [shape: f32[1,128], index: 6, kind: input, shape index: {}]
  %s7 = inlined_call_operand.hbm [shape: f32[8,128], index: 7, kind: output, shape index: {}]
  %s8 = sld [smem:[#allocation0]]
  $region62: #{tpu_custom_call.1} parent=0
    _
  %s10 = ssub.s32 1, %s8
  %s11 = scalar_select 0, %s10, %s8
  $region1: #{tpu_custom_call.1} parent=0
    #allocation2 [shape = 'u8[4096]{0}', space=vmem, size = 0x1000, scoped, tag = 'input window, operand 0, single buffered']
    #allocation3 [shape = 's32[1]{0}', space=sflag, size = 0x4, scoped, tag = 'scoped memory for tpu_custom_call.1']
    #allocation4 [shape = 's32[1]{0}', space=sflag, size = 0x4, scoped, tag = 'scoped memory for tpu_custom_call.1']
    #allocation5 [shape = 'u8[131072]{0}', space=vmem, size = 0x20000, scoped, tag = 'input window, operand 1, single buffered']
    #allocation6 [shape = 's32[1]{0}', space=sflag, size = 0x4, scoped, tag = 'scoped memory for tpu_custom_call.1']
    #allocation7 [shape = 'u8[2048]{0}', space=vmem, size = 0x800, scoped, tag = 'input window, operand 2, single buffered']
    #allocation8 [shape = 'u8[524288]{0}', space=vmem, size = 0x80000, scoped, tag = 'input window, operand 3, single buffered']
    #allocation9 [shape = 's32[1]{0}', space=sflag, size = 0x4, scoped, tag = 'scoped memory for tpu_custom_call.1']
    #allocation10 [shape = 'u8[2048]{0}', space=vmem, size = 0x800, scoped, tag = 'input window, operand 4, single buffered']
    #allocation11 [shape = 'u8[131072]{0}', space=vmem, size = 0x20000, scoped, tag = 'input window, operand 5, single buffered']
    #allocation12 [shape = 's32[1]{0}', space=sflag, size = 0x4, scoped, tag = 'scoped memory for tpu_custom_call.1']
    #allocation13 [shape = 'u8[4096]{0}', space=vmem, size = 0x1000, scoped, tag = 'output window, operand 0, single buffered']
    %12 = vsyncpa [#allocation3], 0
    %13 = vsyncpa [#allocation6], 0
    %14 = vsyncpa [#allocation9], 0
    %15 = vsyncpa [#allocation12], 0
    %16 = vsyncpa [#allocation4], 0
    // Predicated region
    $region2: #{tpu_custom_call.1} parent=1 // pred_check
      _
    $region3: #{tpu_custom_call.1} parent=1 // pred_check_branch
      %18 = sbr.rel (0) target = $region5
    $region4: #{tpu_custom_call.1} parent=1 // pred_region
      %20 = vsyncadd [#allocation3], 0
      %s22 = sshll.u32 %s0, 4
      %s23 = int_to_ptr.hbm [resolvable:$true] %s22
      %s24 = sshll.u32 [#allocation2], 4
      %s25 = int_to_ptr.vmem [resolvable:$true] %s24
      %27 = dma.hbm_to_vmem [thread:$0]  %s23, 128, %s25, [#allocation3]
    $region5: #{tpu_custom_call.1} parent=1 // pred_fallthru
      _
    // Predicated region
    $region6: #{tpu_custom_call.1} parent=1 // pred_check
      _
    $region7: #{tpu_custom_call.1} parent=1 // pred_check_branch
      %29 = sbr.rel (0) target = $region9
    $region8: #{tpu_custom_call.1} parent=1 // pred_region
      %31 = vsyncadd [#allocation6], 0
      %s32 = sshll.u32 %s1, 4
      %s33 = int_to_ptr.hbm [resolvable:$true] %s32
      %s34 = sshll.u32 [#allocation5], 4
      %s35 = int_to_ptr.vmem [resolvable:$true] %s34
      %40 = dma.hbm_to_vmem [thread:$0]  %s33, 4096, %s35, [#allocation6], 256, 256, 16
    $region9: #{tpu_custom_call.1} parent=1 // pred_fallthru
      _
    // Predicated region
    $region10: #{tpu_custom_call.1} parent=1 // pred_check
      _
    $region11: #{tpu_custom_call.1} parent=1 // pred_check_branch
      %42 = sbr.rel (0) target = $region13
    $region12: #{tpu_custom_call.1} parent=1 // pred_region
      %44 = vsyncadd [#allocation6], 0
      %s46 = sshll.u32 %s2, 4
      %s47 = int_to_ptr.hbm [resolvable:$true] %s46
      %s48 = sshll.u32 [#allocation7], 4
      %s49 = int_to_ptr.vmem [resolvable:$true] %s48
      %51 = dma.hbm_to_vmem [thread:$0]  %s47, 64, %s49, [#allocation6]
    $region13: #{tpu_custom_call.1} parent=1 // pred_fallthru
      _
    // Predicated region
    $region14: #{tpu_custom_call.1} parent=1 // pred_check
      _
    $region15: #{tpu_custom_call.1} parent=1 // pred_check_branch
      %53 = sbr.rel (0) target = $region17
    $region16: #{tpu_custom_call.1} parent=1 // pred_region
      %55 = vsyncadd [#allocation9], 0
      %s56 = sshll.u32 %s3, 4
      %s57 = int_to_ptr.hbm [resolvable:$true] %s56
      %s58 = sshll.u32 [#allocation8], 4
      %s59 = int_to_ptr.vmem [resolvable:$true] %s58
      %64 = dma.hbm_to_vmem [thread:$0]  %s57, 16384, %s59, [#allocation9], 256, 256, 16
    $region17: #{tpu_custom_call.1} parent=1 // pred_fallthru
      _
    // Predicated region
    $region18: #{tpu_custom_call.1} parent=1 // pred_check
      _
    $region19: #{tpu_custom_call.1} parent=1 // pred_check_branch
      %66 = sbr.rel (0) target = $region21
    $region20: #{tpu_custom_call.1} parent=1 // pred_region
      %68 = vsyncadd [#allocation9], 0
      %s70 = sshll.u32 %s4, 4
      %s71 = int_to_ptr.hbm [resolvable:$true] %s70
      %s72 = sshll.u32 [#allocation10], 4
      %s73 = int_to_ptr.vmem [resolvable:$true] %s72
      %75 = dma.hbm_to_vmem [thread:$0]  %s71, 64, %s73, [#allocation9]
    $region21: #{tpu_custom_call.1} parent=1 // pred_fallthru
      _
    // Predicated region
    $region22: #{tpu_custom_call.1} parent=1 // pred_check
      _
    $region23: #{tpu_custom_call.1} parent=1 // pred_check_branch
      %77 = sbr.rel (0) target = $region25
    $region24: #{tpu_custom_call.1} parent=1 // pred_region
      %79 = vsyncadd [#allocation12], 0
      %s80 = sshll.u32 %s5, 4
      %s81 = int_to_ptr.hbm [resolvable:$true] %s80
      %s82 = sshll.u32 [#allocation11], 4
      %s83 = int_to_ptr.vmem [resolvable:$true] %s82
      %88 = dma.hbm_to_vmem [thread:$0]  %s81, 4096, %s83, [#allocation12], 64, 64, 4
    $region25: #{tpu_custom_call.1} parent=1 // pred_fallthru
      _
    // Predicated region
    $region26: #{tpu_custom_call.1} parent=1 // pred_check
      _
    $region27: #{tpu_custom_call.1} parent=1 // pred_check_branch
      %90 = sbr.rel (0) target = $region29
    $region28: #{tpu_custom_call.1} parent=1 // pred_region
      _
    $region29: #{tpu_custom_call.1} parent=1 // pred_fallthru
      _
    // Predicated region
    $region30: #{tpu_custom_call.1} parent=1 // pred_check
      _
    $region31: #{tpu_custom_call.1} parent=1 // pred_check_branch
      %92 = sbr.rel (0) target = $region33
    $region32: #{tpu_custom_call.1} parent=1 // pred_region
      %94 = dma.done [#allocation3], 128
    $region33: #{tpu_custom_call.1} parent=1 // pred_fallthru
      _
    // Predicated region
    $region34: #{tpu_custom_call.1} parent=1 // pred_check
      _
    $region35: #{tpu_custom_call.1} parent=1 // pred_check_branch
      %96 = sbr.rel (0) target = $region37
    $region36: #{tpu_custom_call.1} parent=1 // pred_region
      %98 = dma.done [#allocation6], 4096
    $region37: #{tpu_custom_call.1} parent=1 // pred_fallthru
      _
    // Predicated region
    $region38: #{tpu_custom_call.1} parent=1 // pred_check
      _
    $region39: #{tpu_custom_call.1} parent=1 // pred_check_branch
      %100 = sbr.rel (0) target = $region41
    $region40: #{tpu_custom_call.1} parent=1 // pred_region
      %102 = dma.done [#allocation6], 64
    $region41: #{tpu_custom_call.1} parent=1 // pred_fallthru
      _
    // Predicated region
    $region42: #{tpu_custom_call.1} parent=1 // pred_check
      _
    $region43: #{tpu_custom_call.1} parent=1 // pred_check_branch
      %104 = sbr.rel (0) target = $region45
    $region44: #{tpu_custom_call.1} parent=1 // pred_region
      %106 = dma.done [#allocation9], 16384
    $region45: #{tpu_custom_call.1} parent=1 // pred_fallthru
      _
    // Predicated region
    $region46: #{tpu_custom_call.1} parent=1 // pred_check
      _
    $region47: #{tpu_custom_call.1} parent=1 // pred_check_branch
      %108 = sbr.rel (0) target = $region49
    $region48: #{tpu_custom_call.1} parent=1 // pred_region
      %110 = dma.done [#allocation9], 64
    $region49: #{tpu_custom_call.1} parent=1 // pred_fallthru
      _
    // Predicated region
    $region50: #{tpu_custom_call.1} parent=1 // pred_check
      _
    $region51: #{tpu_custom_call.1} parent=1 // pred_check_branch
      %112 = sbr.rel (0) target = $region53
    $region52: #{tpu_custom_call.1} parent=1 // pred_region
      %114 = dma.done [#allocation12], 4096
    $region53: #{tpu_custom_call.1} parent=1 // pred_fallthru
      _
    %v115 = vld [vmem:[#allocation2] sm:$0xff]
    %v116 = vpack.c.bf16 %v115, %v115
    %v117 = vld [vmem:[#allocation5] sm:$0xff]
    %v118 = vld [vmem:[#allocation5 + $0x8] sm:$0xff]
    %v119 = vld [vmem:[#allocation5 + $0x10] sm:$0xff]
    %v120 = vld [vmem:[#allocation5 + $0x18] sm:$0xff]
    %v121 = vld [vmem:[#allocation5 + $0x20] sm:$0xff]
    %v122 = vld [vmem:[#allocation5 + $0x28] sm:$0xff]
    %v123 = vld [vmem:[#allocation5 + $0x30] sm:$0xff]
    %v124 = vld [vmem:[#allocation5 + $0x38] sm:$0xff]
    %v125 = vld [vmem:[#allocation5 + $0x40] sm:$0xff]
    %v126 = vld [vmem:[#allocation5 + $0x48] sm:$0xff]
    %v127 = vld [vmem:[#allocation5 + $0x50] sm:$0xff]
    %v128 = vld [vmem:[#allocation5 + $0x58] sm:$0xff]
    %v129 = vld [vmem:[#allocation5 + $0x60] sm:$0xff]
    %v130 = vld [vmem:[#allocation5 + $0x68] sm:$0xff]
    %v131 = vld [vmem:[#allocation5 + $0x70] sm:$0xff]
    %v132 = vld [vmem:[#allocation5 + $0x78] sm:$0xff]
    %v133 = vld [vmem:[#allocation5 + $0x80] sm:$0xff]
    %v134 = vld [vmem:[#allocation5 + $0x88] sm:$0xff]
    %v135 = vld [vmem:[#allocation5 + $0x90] sm:$0xff]
    %v136 = vld [vmem:[#allocation5 + $0x98] sm:$0xff]
    %v137 = vld [vmem:[#allocation5 + $0xa0] sm:$0xff]
    %v138 = vld [vmem:[#allocation5 + $0xa8] sm:$0xff]
    %v139 = vld [vmem:[#allocation5 + $0xb0] sm:$0xff]
    %v140 = vld [vmem:[#allocation5 + $0xb8] sm:$0xff]
    %v141 = vld [vmem:[#allocation5 + $0xc0] sm:$0xff]
    %v142 = vld [vmem:[#allocation5 + $0xc8] sm:$0xff]
    %v143 = vld [vmem:[#allocation5 + $0xd0] sm:$0xff]
    %v144 = vld [vmem:[#allocation5 + $0xd8] sm:$0xff]
    %v145 = vld [vmem:[#allocation5 + $0xe0] sm:$0xff]
    %v146 = vld [vmem:[#allocation5 + $0xe8] sm:$0xff]
    %v147 = vld [vmem:[#allocation5 + $0xf0] sm:$0xff]
    %v148 = vld [vmem:[#allocation5 + $0xf8] sm:$0xff]
    %v149 = vld [vmem:[#allocation7] sm:$0xf]
    %v151 = vperm.slane %v149, 0
    %v152 = vperm.slane %v149, 1
    %v153 = vperm.slane %v149, 2
    %v154 = vperm.slane %v149, 3
    %v191 = vunpack.c.l.b16 %v117
    %v192 = vunpack.c.h.b16 %v117
    %v193 = vunpack.c.l.b16 %v118
    %v194 = vunpack.c.h.b16 %v118
    %v195 = vunpack.c.l.b16 %v119
    %v196 = vunpack.c.h.b16 %v119
    %v197 = vunpack.c.l.b16 %v120
    %v198 = vunpack.c.h.b16 %v120
    %v199 = vunpack.c.l.b16 %v121
    %v200 = vunpack.c.h.b16 %v121
    %v201 = vunpack.c.l.b16 %v122
    %v202 = vunpack.c.h.b16 %v122
    %v203 = vunpack.c.l.b16 %v123
    %v204 = vunpack.c.h.b16 %v123
    %v205 = vunpack.c.l.b16 %v124
    %v206 = vunpack.c.h.b16 %v124
    %v207 = vunpack.c.l.b16 %v125
    %v208 = vunpack.c.h.b16 %v125
    %v209 = vunpack.c.l.b16 %v126
    %v210 = vunpack.c.h.b16 %v126
    %v211 = vunpack.c.l.b16 %v127
    %v212 = vunpack.c.h.b16 %v127
    %v213 = vunpack.c.l.b16 %v128
    %v214 = vunpack.c.h.b16 %v128
    %v215 = vunpack.c.l.b16 %v129
    %v216 = vunpack.c.h.b16 %v129
    %v217 = vunpack.c.l.b16 %v130
    %v218 = vunpack.c.h.b16 %v130
    %v219 = vunpack.c.l.b16 %v131
    %v220 = vunpack.c.h.b16 %v131
    %v221 = vunpack.c.l.b16 %v132
    %v222 = vunpack.c.h.b16 %v132
    %v223 = vunpack.c.l.b16 %v133
    %v224 = vunpack.c.h.b16 %v133
    %v225 = vunpack.c.l.b16 %v134
    %v226 = vunpack.c.h.b16 %v134
    %v227 = vunpack.c.l.b16 %v135
    %v228 = vunpack.c.h.b16 %v135
    %v229 = vunpack.c.l.b16 %v136
    %v230 = vunpack.c.h.b16 %v136
    %v231 = vunpack.c.l.b16 %v137
    %v232 = vunpack.c.h.b16 %v137
    %v233 = vunpack.c.l.b16 %v138
    %v234 = vunpack.c.h.b16 %v138
    %v235 = vunpack.c.l.b16 %v139
    %v236 = vunpack.c.h.b16 %v139
    %v237 = vunpack.c.l.b16 %v140
    %v238 = vunpack.c.h.b16 %v140
    %v239 = vunpack.c.l.b16 %v141
    %v240 = vunpack.c.h.b16 %v141
    %v241 = vunpack.c.l.b16 %v142
    %v242 = vunpack.c.h.b16 %v142
    %v243 = vunpack.c.l.b16 %v143
    %v244 = vunpack.c.h.b16 %v143
    %v245 = vunpack.c.l.b16 %v144
    %v246 = vunpack.c.h.b16 %v144
    %v247 = vunpack.c.l.b16 %v145
    %v248 = vunpack.c.h.b16 %v145
    %v249 = vunpack.c.l.b16 %v146
    %v250 = vunpack.c.h.b16 %v146
    %v251 = vunpack.c.l.b16 %v147
    %v252 = vunpack.c.h.b16 %v147
    %v253 = vunpack.c.l.b16 %v148
    %v254 = vunpack.c.h.b16 %v148
    %v255 = vpack.c.b16 %v195, %v191
    %v256 = vpack.c.b16 %v196, %v192
    %v257 = vpack.c.b16 %v197, %v193
    %v258 = vpack.c.b16 %v198, %v194
    %v259 = vpack.c.b16 %v203, %v199
    %v260 = vpack.c.b16 %v204, %v200
    %v261 = vpack.c.b16 %v205, %v201
    %v262 = vpack.c.b16 %v206, %v202
    %v263 = vpack.c.b16 %v211, %v207
    %v264 = vpack.c.b16 %v212, %v208
    %v265 = vpack.c.b16 %v213, %v209
    %v266 = vpack.c.b16 %v214, %v210
    %v267 = vpack.c.b16 %v219, %v215
    %v268 = vpack.c.b16 %v220, %v216
    %v269 = vpack.c.b16 %v221, %v217
    %v270 = vpack.c.b16 %v222, %v218
    %v271 = vpack.c.b16 %v227, %v223
    %v272 = vpack.c.b16 %v228, %v224
    %v273 = vpack.c.b16 %v229, %v225
    %v274 = vpack.c.b16 %v230, %v226
    %v275 = vpack.c.b16 %v235, %v231
    %v276 = vpack.c.b16 %v236, %v232
    %v277 = vpack.c.b16 %v237, %v233
    %v278 = vpack.c.b16 %v238, %v234
    %v279 = vpack.c.b16 %v243, %v239
    %v280 = vpack.c.b16 %v244, %v240
    %v281 = vpack.c.b16 %v245, %v241
    %v282 = vpack.c.b16 %v246, %v242
    %v283 = vpack.c.b16 %v251, %v247
    %v284 = vpack.c.b16 %v252, %v248
    %v285 = vpack.c.b16 %v253, %v249
    %v286 = vpack.c.b16 %v254, %v250
    %319 = vmatpush.bf16.msra.mxu0 %v283
    %320 = vmatpush.bf16.msra.mxu0 %v279
    %321 = vmatpush.bf16.msra.mxu0 %v275
    %322 = vmatpush.bf16.msra.mxu0 %v271
    %323 = vmatpush.bf16.msra.mxu0 %v267
    %324 = vmatpush.bf16.msra.mxu0 %v263
    %325 = vmatpush.bf16.msra.mxu0 %v259
    %326 = vmatpush.bf16.msra.mxu0 %v255
    %327 = vmatmul.bf16.gmra.mxu0 %v116
    %v328 = vpop.f32.mrf.mxu0
    %v329 = vadd.f32 %v151, %v328
    %v330 = vpop.f32.mrf.mxu0
    %331 = vdwg.mxu0
    %332 = vmatpush.bf16.msra.mxu0 %v284
    %333 = vmatpush.bf16.msra.mxu0 %v280
    %334 = vmatpush.bf16.msra.mxu0 %v276
    %335 = vmatpush.bf16.msra.mxu0 %v272
    %336 = vmatpush.bf16.msra.mxu0 %v268
    %337 = vmatpush.bf16.msra.mxu0 %v264
    %338 = vmatpush.bf16.msra.mxu0 %v260
    %339 = vmatpush.bf16.msra.mxu0 %v256
    %340 = vmatmul.bf16.gmra.mxu0 %v116
    %v341 = vpop.f32.mrf.mxu0
    %v342 = vadd.f32 %v152, %v341
    %v343 = vpop.f32.mrf.mxu0
    %344 = vdwg.mxu0
    %345 = vmatpush.bf16.msra.mxu0 %v285
    %346 = vmatpush.bf16.msra.mxu0 %v281
    %347 = vmatpush.bf16.msra.mxu0 %v277
    %348 = vmatpush.bf16.msra.mxu0 %v273
    %349 = vmatpush.bf16.msra.mxu0 %v269
    %350 = vmatpush.bf16.msra.mxu0 %v265
    %351 = vmatpush.bf16.msra.mxu0 %v261
    %352 = vmatpush.bf16.msra.mxu0 %v257
    %353 = vmatmul.bf16.gmra.mxu0 %v116
    %v354 = vpop.f32.mrf.mxu0
    %v355 = vadd.f32 %v153, %v354
    %v356 = vpop.f32.mrf.mxu0
    %357 = vdwg.mxu0
    %358 = vmatpush.bf16.msra.mxu0 %v286
    %359 = vmatpush.bf16.msra.mxu0 %v282
    %360 = vmatpush.bf16.msra.mxu0 %v278
    %361 = vmatpush.bf16.msra.mxu0 %v274
    %362 = vmatpush.bf16.msra.mxu0 %v270
    %363 = vmatpush.bf16.msra.mxu0 %v266
    %364 = vmatpush.bf16.msra.mxu0 %v262
    %365 = vmatpush.bf16.msra.mxu0 %v258
    %366 = vmatmul.bf16.gmra.mxu0 %v116
    %v367 = vpop.f32.mrf.mxu0
    %v368 = vadd.f32 %v154, %v367
    %v369 = vpop.f32.mrf.mxu0
    %370 = vdwg.mxu0
    %v371 = vmax.f32 %v329, 0.0
    %v372 = vmax.f32 %v342, 0.0
    %v373 = vmax.f32 %v355, 0.0
    %v374 = vmax.f32 %v368, 0.0
    %v375 = vpack.c.bf16 %v371, %v371
    %v376 = vpack.c.bf16 %v372, %v372
    %v377 = vpack.c.bf16 %v373, %v373
    %v378 = vpack.c.bf16 %v374, %v374
    %v379 = vld [vmem:[#allocation8] sm:$0xff]
    %v380 = vld [vmem:[#allocation8 + $0x8] sm:$0xff]
    %v381 = vld [vmem:[#allocation8 + $0x10] sm:$0xff]
    %v382 = vld [vmem:[#allocation8 + $0x18] sm:$0xff]
    %v383 = vld [vmem:[#allocation8 + $0x20] sm:$0xff]
    %v384 = vld [vmem:[#allocation8 + $0x28] sm:$0xff]
    %v385 = vld [vmem:[#allocation8 + $0x30] sm:$0xff]
    %v386 = vld [vmem:[#allocation8 + $0x38] sm:$0xff]
    %v387 = vld [vmem:[#allocation8 + $0x40] sm:$0xff]
    %v388 = vld [vmem:[#allocation8 + $0x48] sm:$0xff]
    %v389 = vld [vmem:[#allocation8 + $0x50] sm:$0xff]
    %v390 = vld [vmem:[#allocation8 + $0x58] sm:$0xff]
    %v391 = vld [vmem:[#allocation8 + $0x60] sm:$0xff]
    %v392 = vld [vmem:[#allocation8 + $0x68] sm:$0xff]
    %v393 = vld [vmem:[#allocation8 + $0x70] sm:$0xff]
    %v394 = vld [vmem:[#allocation8 + $0x78] sm:$0xff]
    %v395 = vld [vmem:[#allocation8 + $0x80] sm:$0xff]
    %v396 = vld [vmem:[#allocation8 + $0x88] sm:$0xff]
    %v397 = vld [vmem:[#allocation8 + $0x90] sm:$0xff]
    %v398 = vld [vmem:[#allocation8 + $0x98] sm:$0xff]
    %v399 = vld [vmem:[#allocation8 + $0xa0] sm:$0xff]
    %v400 = vld [vmem:[#allocation8 + $0xa8] sm:$0xff]
    %v401 = vld [vmem:[#allocation8 + $0xb0] sm:$0xff]
    %v402 = vld [vmem:[#allocation8 + $0xb8] sm:$0xff]
    %v403 = vld [vmem:[#allocation8 + $0xc0] sm:$0xff]
    %v404 = vld [vmem:[#allocation8 + $0xc8] sm:$0xff]
    %v405 = vld [vmem:[#allocation8 + $0xd0] sm:$0xff]
    %v406 = vld [vmem:[#allocation8 + $0xd8] sm:$0xff]
    %v407 = vld [vmem:[#allocation8 + $0xe0] sm:$0xff]
    %v408 = vld [vmem:[#allocation8 + $0xe8] sm:$0xff]
    %v409 = vld [vmem:[#allocation8 + $0xf0] sm:$0xff]
    %v410 = vld [vmem:[#allocation8 + $0xf8] sm:$0xff]
    %v411 = vld [vmem:[#allocation8 + $0x100] sm:$0xff]
    %v412 = vld [vmem:[#allocation8 + $0x108] sm:$0xff]
    %v413 = vld [vmem:[#allocation8 + $0x110] sm:$0xff]
    %v414 = vld [vmem:[#allocation8 + $0x118] sm:$0xff]
    %v415 = vld [vmem:[#allocation8 + $0x120] sm:$0xff]
    %v416 = vld [vmem:[#allocation8 + $0x128] sm:$0xff]
    %v417 = vld [vmem:[#allocation8 + $0x130] sm:$0xff]
    %v418 = vld [vmem:[#allocation8 + $0x138] sm:$0xff]
    %v419 = vld [vmem:[#allocation8 + $0x140] sm:$0xff]
    %v420 = vld [vmem:[#allocation8 + $0x148] sm:$0xff]
    %v421 = vld [vmem:[#allocation8 + $0x150] sm:$0xff]
    %v422 = vld [vmem:[#allocation8 + $0x158] sm:$0xff]
    %v423 = vld [vmem:[#allocation8 + $0x160] sm:$0xff]
    %v424 = vld [vmem:[#allocation8 + $0x168] sm:$0xff]
    %v425 = vld [vmem:[#allocation8 + $0x170] sm:$0xff]
    %v426 = vld [vmem:[#allocation8 + $0x178] sm:$0xff]
    %v427 = vld [vmem:[#allocation8 + $0x180] sm:$0xff]
    %v428 = vld [vmem:[#allocation8 + $0x188] sm:$0xff]
    %v429 = vld [vmem:[#allocation8 + $0x190] sm:$0xff]
    %v430 = vld [vmem:[#allocation8 + $0x198] sm:$0xff]
    %v431 = vld [vmem:[#allocation8 + $0x1a0] sm:$0xff]
    %v432 = vld [vmem:[#allocation8 + $0x1a8] sm:$0xff]
    %v433 = vld [vmem:[#allocation8 + $0x1b0] sm:$0xff]
    %v434 = vld [vmem:[#allocation8 + $0x1b8] sm:$0xff]
    %v435 = vld [vmem:[#allocation8 + $0x1c0] sm:$0xff]
    %v436 = vld [vmem:[#allocation8 + $0x1c8] sm:$0xff]
    %v437 = vld [vmem:[#allocation8 + $0x1d0] sm:$0xff]
    %v438 = vld [vmem:[#allocation8 + $0x1d8] sm:$0xff]
    %v439 = vld [vmem:[#allocation8 + $0x1e0] sm:$0xff]
    %v440 = vld [vmem:[#allocation8 + $0x1e8] sm:$0xff]
    %v441 = vld [vmem:[#allocation8 + $0x1f0] sm:$0xff]
    %v442 = vld [vmem:[#allocation8 + $0x1f8] sm:$0xff]
    %v443 = vld [vmem:[#allocation8 + $0x200] sm:$0xff]
    %v444 = vld [vmem:[#allocation8 + $0x208] sm:$0xff]
    %v445 = vld [vmem:[#allocation8 + $0x210] sm:$0xff]
    %v446 = vld [vmem:[#allocation8 + $0x218] sm:$0xff]
    %v447 = vld [vmem:[#allocation8 + $0x220] sm:$0xff]
    %v448 = vld [vmem:[#allocation8 + $0x228] sm:$0xff]
    %v449 = vld [vmem:[#allocation8 + $0x230] sm:$0xff]
    %v450 = vld [vmem:[#allocation8 + $0x238] sm:$0xff]
    %v451 = vld [vmem:[#allocation8 + $0x240] sm:$0xff]
    %v452 = vld [vmem:[#allocation8 + $0x248] sm:$0xff]
    %v453 = vld [vmem:[#allocation8 + $0x250] sm:$0xff]
    %v454 = vld [vmem:[#allocation8 + $0x258] sm:$0xff]
    %v455 = vld [vmem:[#allocation8 + $0x260] sm:$0xff]
    %v456 = vld [vmem:[#allocation8 + $0x268] sm:$0xff]
    %v457 = vld [vmem:[#allocation8 + $0x270] sm:$0xff]
    %v458 = vld [vmem:[#allocation8 + $0x278] sm:$0xff]
    %v459 = vld [vmem:[#allocation8 + $0x280] sm:$0xff]
    %v460 = vld [vmem:[#allocation8 + $0x288] sm:$0xff]
    %v461 = vld [vmem:[#allocation8 + $0x290] sm:$0xff]
    %v462 = vld [vmem:[#allocation8 + $0x298] sm:$0xff]
    %v463 = vld [vmem:[#allocation8 + $0x2a0] sm:$0xff]
    %v464 = vld [vmem:[#allocation8 + $0x2a8] sm:$0xff]
    %v465 = vld [vmem:[#allocation8 + $0x2b0] sm:$0xff]
    %v466 = vld [vmem:[#allocation8 + $0x2b8] sm:$0xff]
    %v467 = vld [vmem:[#allocation8 + $0x2c0] sm:$0xff]
    %v468 = vld [vmem:[#allocation8 + $0x2c8] sm:$0xff]
    %v469 = vld [vmem:[#allocation8 + $0x2d0] sm:$0xff]
    %v470 = vld [vmem:[#allocation8 + $0x2d8] sm:$0xff]
    %v471 = vld [vmem:[#allocation8 + $0x2e0] sm:$0xff]
    %v472 = vld [vmem:[#allocation8 + $0x2e8] sm:$0xff]
    %v473 = vld [vmem:[#allocation8 + $0x2f0] sm:$0xff]
    %v474 = vld [vmem:[#allocation8 + $0x2f8] sm:$0xff]
    %v475 = vld [vmem:[#allocation8 + $0x300] sm:$0xff]
    %v476 = vld [vmem:[#allocation8 + $0x308] sm:$0xff]
    %v477 = vld [vmem:[#allocation8 + $0x310] sm:$0xff]
    %v478 = vld [vmem:[#allocation8 + $0x318] sm:$0xff]
    %v479 = vld [vmem:[#allocation8 + $0x320] sm:$0xff]
    %v480 = vld [vmem:[#allocation8 + $0x328] sm:$0xff]
    %v481 = vld [vmem:[#allocation8 + $0x330] sm:$0xff]
    %v482 = vld [vmem:[#allocation8 + $0x338] sm:$0xff]
    %v483 = vld [vmem:[#allocation8 + $0x340] sm:$0xff]
    %v484 = vld [vmem:[#allocation8 + $0x348] sm:$0xff]
    %v485 = vld [vmem:[#allocation8 + $0x350] sm:$0xff]
    %v486 = vld [vmem:[#allocation8 + $0x358] sm:$0xff]
    %v487 = vld [vmem:[#allocation8 + $0x360] sm:$0xff]
    %v488 = vld [vmem:[#allocation8 + $0x368] sm:$0xff]
    %v489 = vld [vmem:[#allocation8 + $0x370] sm:$0xff]
    %v490 = vld [vmem:[#allocation8 + $0x378] sm:$0xff]
    %v491 = vld [vmem:[#allocation8 + $0x380] sm:$0xff]
    %v492 = vld [vmem:[#allocation8 + $0x388] sm:$0xff]
    %v493 = vld [vmem:[#allocation8 + $0x390] sm:$0xff]
    %v494 = vld [vmem:[#allocation8 + $0x398] sm:$0xff]
    %v495 = vld [vmem:[#allocation8 + $0x3a0] sm:$0xff]
    %v496 = vld [vmem:[#allocation8 + $0x3a8] sm:$0xff]
    %v497 = vld [vmem:[#allocation8 + $0x3b0] sm:$0xff]
    %v498 = vld [vmem:[#allocation8 + $0x3b8] sm:$0xff]
    %v499 = vld [vmem:[#allocation8 + $0x3c0] sm:$0xff]
    %v500 = vld [vmem:[#allocation8 + $0x3c8] sm:$0xff]
    %v501 = vld [vmem:[#allocation8 + $0x3d0] sm:$0xff]
    %v502 = vld [vmem:[#allocation8 + $0x3d8] sm:$0xff]
    %v503 = vld [vmem:[#allocation8 + $0x3e0] sm:$0xff]
    %v504 = vld [vmem:[#allocation8 + $0x3e8] sm:$0xff]
    %v505 = vld [vmem:[#allocation8 + $0x3f0] sm:$0xff]
    %v506 = vld [vmem:[#allocation8 + $0x3f8] sm:$0xff]
    %v507 = vld [vmem:[#allocation10] sm:$0xf]
    %v509 = vperm.slane %v507, 0
    %v510 = vperm.slane %v507, 1
    %v511 = vperm.slane %v507, 2
    %v512 = vperm.slane %v507, 3
    %v645 = vunpack.c.l.b16 %v379
    %v646 = vunpack.c.h.b16 %v379
    %v647 = vunpack.c.l.b16 %v380
    %v648 = vunpack.c.h.b16 %v380
    %v649 = vunpack.c.l.b16 %v381
    %v650 = vunpack.c.h.b16 %v381
    %v651 = vunpack.c.l.b16 %v382
    %v652 = vunpack.c.h.b16 %v382
    %v653 = vunpack.c.l.b16 %v383
    %v654 = vunpack.c.h.b16 %v383
    %v655 = vunpack.c.l.b16 %v384
    %v656 = vunpack.c.h.b16 %v384
    %v657 = vunpack.c.l.b16 %v385
    %v658 = vunpack.c.h.b16 %v385
    %v659 = vunpack.c.l.b16 %v386
    %v660 = vunpack.c.h.b16 %v386
    %v661 = vunpack.c.l.b16 %v387
    %v662 = vunpack.c.h.b16 %v387
    %v663 = vunpack.c.l.b16 %v388
    %v664 = vunpack.c.h.b16 %v388
    %v665 = vunpack.c.l.b16 %v389
    %v666 = vunpack.c.h.b16 %v389
    %v667 = vunpack.c.l.b16 %v390
    %v668 = vunpack.c.h.b16 %v390
    %v669 = vunpack.c.l.b16 %v391
    %v670 = vunpack.c.h.b16 %v391
    %v671 = vunpack.c.l.b16 %v392
    %v672 = vunpack.c.h.b16 %v392
    %v673 = vunpack.c.l.b16 %v393
    %v674 = vunpack.c.h.b16 %v393
    %v675 = vunpack.c.l.b16 %v394
    %v676 = vunpack.c.h.b16 %v394
    %v677 = vunpack.c.l.b16 %v395
    %v678 = vunpack.c.h.b16 %v395
    %v679 = vunpack.c.l.b16 %v396
    %v680 = vunpack.c.h.b16 %v396
    %v681 = vunpack.c.l.b16 %v397
    %v682 = vunpack.c.h.b16 %v397
    %v683 = vunpack.c.l.b16 %v398
    %v684 = vunpack.c.h.b16 %v398
    %v685 = vunpack.c.l.b16 %v399
    %v686 = vunpack.c.h.b16 %v399
    %v687 = vunpack.c.l.b16 %v400
    %v688 = vunpack.c.h.b16 %v400
    %v689 = vunpack.c.l.b16 %v401
    %v690 = vunpack.c.h.b16 %v401
    %v691 = vunpack.c.l.b16 %v402
    %v692 = vunpack.c.h.b16 %v402
    %v693 = vunpack.c.l.b16 %v403
    %v694 = vunpack.c.h.b16 %v403
    %v695 = vunpack.c.l.b16 %v404
    %v696 = vunpack.c.h.b16 %v404
    %v697 = vunpack.c.l.b16 %v405
    %v698 = vunpack.c.h.b16 %v405
    %v699 = vunpack.c.l.b16 %v406
    %v700 = vunpack.c.h.b16 %v406
    %v701 = vunpack.c.l.b16 %v407
    %v702 = vunpack.c.h.b16 %v407
    %v703 = vunpack.c.l.b16 %v408
    %v704 = vunpack.c.h.b16 %v408
    %v705 = vunpack.c.l.b16 %v409
    %v706 = vunpack.c.h.b16 %v409
    %v707 = vunpack.c.l.b16 %v410
    %v708 = vunpack.c.h.b16 %v410
    %v709 = vunpack.c.l.b16 %v411
    %v710 = vunpack.c.h.b16 %v411
    %v711 = vunpack.c.l.b16 %v412
    %v712 = vunpack.c.h.b16 %v412
    %v713 = vunpack.c.l.b16 %v413
    %v714 = vunpack.c.h.b16 %v413
    %v715 = vunpack.c.l.b16 %v414
    %v716 = vunpack.c.h.b16 %v414
    %v717 = vunpack.c.l.b16 %v415
    %v718 = vunpack.c.h.b16 %v415
    %v719 = vunpack.c.l.b16 %v416
    %v720 = vunpack.c.h.b16 %v416
    %v721 = vunpack.c.l.b16 %v417
    %v722 = vunpack.c.h.b16 %v417
    %v723 = vunpack.c.l.b16 %v418
    %v724 = vunpack.c.h.b16 %v418
    %v725 = vunpack.c.l.b16 %v419
    %v726 = vunpack.c.h.b16 %v419
    %v727 = vunpack.c.l.b16 %v420
    %v728 = vunpack.c.h.b16 %v420
    %v729 = vunpack.c.l.b16 %v421
    %v730 = vunpack.c.h.b16 %v421
    %v731 = vunpack.c.l.b16 %v422
    %v732 = vunpack.c.h.b16 %v422
    %v733 = vunpack.c.l.b16 %v423
    %v734 = vunpack.c.h.b16 %v423
    %v735 = vunpack.c.l.b16 %v424
    %v736 = vunpack.c.h.b16 %v424
    %v737 = vunpack.c.l.b16 %v425
    %v738 = vunpack.c.h.b16 %v425
    %v739 = vunpack.c.l.b16 %v426
    %v740 = vunpack.c.h.b16 %v426
    %v741 = vunpack.c.l.b16 %v427
    %v742 = vunpack.c.h.b16 %v427
    %v743 = vunpack.c.l.b16 %v428
    %v744 = vunpack.c.h.b16 %v428
    %v745 = vunpack.c.l.b16 %v429
    %v746 = vunpack.c.h.b16 %v429
    %v747 = vunpack.c.l.b16 %v430
    %v748 = vunpack.c.h.b16 %v430
    %v749 = vunpack.c.l.b16 %v431
    %v750 = vunpack.c.h.b16 %v431
    %v751 = vunpack.c.l.b16 %v432
    %v752 = vunpack.c.h.b16 %v432
    %v753 = vunpack.c.l.b16 %v433
    %v754 = vunpack.c.h.b16 %v433
    %v755 = vunpack.c.l.b16 %v434
    %v756 = vunpack.c.h.b16 %v434
    %v757 = vunpack.c.l.b16 %v435
    %v758 = vunpack.c.h.b16 %v435
    %v759 = vunpack.c.l.b16 %v436
    %v760 = vunpack.c.h.b16 %v436
    %v761 = vunpack.c.l.b16 %v437
    %v762 = vunpack.c.h.b16 %v437
    %v763 = vunpack.c.l.b16 %v438
    %v764 = vunpack.c.h.b16 %v438
    %v765 = vunpack.c.l.b16 %v439
    %v766 = vunpack.c.h.b16 %v439
    %v767 = vunpack.c.l.b16 %v440
    %v768 = vunpack.c.h.b16 %v440
    %v769 = vunpack.c.l.b16 %v441
    %v770 = vunpack.c.h.b16 %v441
    %v771 = vunpack.c.l.b16 %v442
    %v772 = vunpack.c.h.b16 %v442
    %v773 = vunpack.c.l.b16 %v443
    %v774 = vunpack.c.h.b16 %v443
    %v775 = vunpack.c.l.b16 %v444
    %v776 = vunpack.c.h.b16 %v444
    %v777 = vunpack.c.l.b16 %v445
    %v778 = vunpack.c.h.b16 %v445
    %v779 = vunpack.c.l.b16 %v446
    %v780 = vunpack.c.h.b16 %v446
    %v781 = vunpack.c.l.b16 %v447
    %v782 = vunpack.c.h.b16 %v447
    %v783 = vunpack.c.l.b16 %v448
    %v784 = vunpack.c.h.b16 %v448
    %v785 = vunpack.c.l.b16 %v449
    %v786 = vunpack.c.h.b16 %v449
    %v787 = vunpack.c.l.b16 %v450
    %v788 = vunpack.c.h.b16 %v450
    %v789 = vunpack.c.l.b16 %v451
    %v790 = vunpack.c.h.b16 %v451
    %v791 = vunpack.c.l.b16 %v452
    %v792 = vunpack.c.h.b16 %v452
    %v793 = vunpack.c.l.b16 %v453
    %v794 = vunpack.c.h.b16 %v453
    %v795 = vunpack.c.l.b16 %v454
    %v796 = vunpack.c.h.b16 %v454
    %v797 = vunpack.c.l.b16 %v455
    %v798 = vunpack.c.h.b16 %v455
    %v799 = vunpack.c.l.b16 %v456
    %v800 = vunpack.c.h.b16 %v456
    %v801 = vunpack.c.l.b16 %v457
    %v802 = vunpack.c.h.b16 %v457
    %v803 = vunpack.c.l.b16 %v458
    %v804 = vunpack.c.h.b16 %v458
    %v805 = vunpack.c.l.b16 %v459
    %v806 = vunpack.c.h.b16 %v459
    %v807 = vunpack.c.l.b16 %v460
    %v808 = vunpack.c.h.b16 %v460
    %v809 = vunpack.c.l.b16 %v461
    %v810 = vunpack.c.h.b16 %v461
    %v811 = vunpack.c.l.b16 %v462
    %v812 = vunpack.c.h.b16 %v462
    %v813 = vunpack.c.l.b16 %v463
    %v814 = vunpack.c.h.b16 %v463
    %v815 = vunpack.c.l.b16 %v464
    %v816 = vunpack.c.h.b16 %v464
    %v817 = vunpack.c.l.b16 %v465
    %v818 = vunpack.c.h.b16 %v465
    %v819 = vunpack.c.l.b16 %v466
    %v820 = vunpack.c.h.b16 %v466
    %v821 = vunpack.c.l.b16 %v467
    %v822 = vunpack.c.h.b16 %v467
    %v823 = vunpack.c.l.b16 %v468
    %v824 = vunpack.c.h.b16 %v468
    %v825 = vunpack.c.l.b16 %v469
    %v826 = vunpack.c.h.b16 %v469
    %v827 = vunpack.c.l.b16 %v470
    %v828 = vunpack.c.h.b16 %v470
    %v829 = vunpack.c.l.b16 %v471
    %v830 = vunpack.c.h.b16 %v471
    %v831 = vunpack.c.l.b16 %v472
    %v832 = vunpack.c.h.b16 %v472
    %v833 = vunpack.c.l.b16 %v473
    %v834 = vunpack.c.h.b16 %v473
    %v835 = vunpack.c.l.b16 %v474
    %v836 = vunpack.c.h.b16 %v474
    %v837 = vunpack.c.l.b16 %v475
    %v838 = vunpack.c.h.b16 %v475
    %v839 = vunpack.c.l.b16 %v476
    %v840 = vunpack.c.h.b16 %v476
    %v841 = vunpack.c.l.b16 %v477
    %v842 = vunpack.c.h.b16 %v477
    %v843 = vunpack.c.l.b16 %v478
    %v844 = vunpack.c.h.b16 %v478
    %v845 = vunpack.c.l.b16 %v479
    %v846 = vunpack.c.h.b16 %v479
    %v847 = vunpack.c.l.b16 %v480
    %v848 = vunpack.c.h.b16 %v480
    %v849 = vunpack.c.l.b16 %v481
    %v850 = vunpack.c.h.b16 %v481
    %v851 = vunpack.c.l.b16 %v482
    %v852 = vunpack.c.h.b16 %v482
    %v853 = vunpack.c.l.b16 %v483
    %v854 = vunpack.c.h.b16 %v483
    %v855 = vunpack.c.l.b16 %v484
    %v856 = vunpack.c.h.b16 %v484
    %v857 = vunpack.c.l.b16 %v485
    %v858 = vunpack.c.h.b16 %v485
    %v859 = vunpack.c.l.b16 %v486
    %v860 = vunpack.c.h.b16 %v486
    %v861 = vunpack.c.l.b16 %v487
    %v862 = vunpack.c.h.b16 %v487
    %v863 = vunpack.c.l.b16 %v488
    %v864 = vunpack.c.h.b16 %v488
    %v865 = vunpack.c.l.b16 %v489
    %v866 = vunpack.c.h.b16 %v489
    %v867 = vunpack.c.l.b16 %v490
    %v868 = vunpack.c.h.b16 %v490
    %v869 = vunpack.c.l.b16 %v491
    %v870 = vunpack.c.h.b16 %v491
    %v871 = vunpack.c.l.b16 %v492
    %v872 = vunpack.c.h.b16 %v492
    %v873 = vunpack.c.l.b16 %v493
    %v874 = vunpack.c.h.b16 %v493
    %v875 = vunpack.c.l.b16 %v494
    %v876 = vunpack.c.h.b16 %v494
    %v877 = vunpack.c.l.b16 %v495
    %v878 = vunpack.c.h.b16 %v495
    %v879 = vunpack.c.l.b16 %v496
    %v880 = vunpack.c.h.b16 %v496
    %v881 = vunpack.c.l.b16 %v497
    %v882 = vunpack.c.h.b16 %v497
    %v883 = vunpack.c.l.b16 %v498
    %v884 = vunpack.c.h.b16 %v498
    %v885 = vunpack.c.l.b16 %v499
    %v886 = vunpack.c.h.b16 %v499
    %v887 = vunpack.c.l.b16 %v500
    %v888 = vunpack.c.h.b16 %v500
    %v889 = vunpack.c.l.b16 %v501
    %v890 = vunpack.c.h.b16 %v501
    %v891 = vunpack.c.l.b16 %v502
    %v892 = vunpack.c.h.b16 %v502
    %v893 = vunpack.c.l.b16 %v503
    %v894 = vunpack.c.h.b16 %v503
    %v895 = vunpack.c.l.b16 %v504
    %v896 = vunpack.c.h.b16 %v504
    %v897 = vunpack.c.l.b16 %v505
    %v898 = vunpack.c.h.b16 %v505
    %v899 = vunpack.c.l.b16 %v506
    %v900 = vunpack.c.h.b16 %v506
    %v901 = vpack.c.b16 %v649, %v645
    %v902 = vpack.c.b16 %v650, %v646
    %v903 = vpack.c.b16 %v651, %v647
    %v904 = vpack.c.b16 %v652, %v648
    %v905 = vpack.c.b16 %v657, %v653
    %v906 = vpack.c.b16 %v658, %v654
    %v907 = vpack.c.b16 %v659, %v655
    %v908 = vpack.c.b16 %v660, %v656
    %v909 = vpack.c.b16 %v665, %v661
    %v910 = vpack.c.b16 %v666, %v662
    %v911 = vpack.c.b16 %v667, %v663
    %v912 = vpack.c.b16 %v668, %v664
    %v913 = vpack.c.b16 %v673, %v669
    %v914 = vpack.c.b16 %v674, %v670
    %v915 = vpack.c.b16 %v675, %v671
    %v916 = vpack.c.b16 %v676, %v672
    %v917 = vpack.c.b16 %v681, %v677
    %v918 = vpack.c.b16 %v682, %v678
    %v919 = vpack.c.b16 %v683, %v679
    %v920 = vpack.c.b16 %v684, %v680
    %v921 = vpack.c.b16 %v689, %v685
    %v922 = vpack.c.b16 %v690, %v686
    %v923 = vpack.c.b16 %v691, %v687
    %v924 = vpack.c.b16 %v692, %v688
    %v925 = vpack.c.b16 %v697, %v693
    %v926 = vpack.c.b16 %v698, %v694
    %v927 = vpack.c.b16 %v699, %v695
    %v928 = vpack.c.b16 %v700, %v696
    %v929 = vpack.c.b16 %v705, %v701
    %v930 = vpack.c.b16 %v706, %v702
    %v931 = vpack.c.b16 %v707, %v703
    %v932 = vpack.c.b16 %v708, %v704
    %v933 = vpack.c.b16 %v713, %v709
    %v934 = vpack.c.b16 %v714, %v710
    %v935 = vpack.c.b16 %v715, %v711
    %v936 = vpack.c.b16 %v716, %v712
    %v937 = vpack.c.b16 %v721, %v717
    %v938 = vpack.c.b16 %v722, %v718
    %v939 = vpack.c.b16 %v723, %v719
    %v940 = vpack.c.b16 %v724, %v720
    %v941 = vpack.c.b16 %v729, %v725
    %v942 = vpack.c.b16 %v730, %v726
    %v943 = vpack.c.b16 %v731, %v727
    %v944 = vpack.c.b16 %v732, %v728
    %v945 = vpack.c.b16 %v737, %v733
    %v946 = vpack.c.b16 %v738, %v734
    %v947 = vpack.c.b16 %v739, %v735
    %v948 = vpack.c.b16 %v740, %v736
    %v949 = vpack.c.b16 %v745, %v741
    %v950 = vpack.c.b16 %v746, %v742
    %v951 = vpack.c.b16 %v747, %v743
    %v952 = vpack.c.b16 %v748, %v744
    %v953 = vpack.c.b16 %v753, %v749
    %v954 = vpack.c.b16 %v754, %v750
    %v955 = vpack.c.b16 %v755, %v751
    %v956 = vpack.c.b16 %v756, %v752
    %v957 = vpack.c.b16 %v761, %v757
    %v958 = vpack.c.b16 %v762, %v758
    %v959 = vpack.c.b16 %v763, %v759
    %v960 = vpack.c.b16 %v764, %v760
    %v961 = vpack.c.b16 %v769, %v765
    %v962 = vpack.c.b16 %v770, %v766
    %v963 = vpack.c.b16 %v771, %v767
    %v964 = vpack.c.b16 %v772, %v768
    %v965 = vpack.c.b16 %v777, %v773
    %v966 = vpack.c.b16 %v778, %v774
    %v967 = vpack.c.b16 %v779, %v775
    %v968 = vpack.c.b16 %v780, %v776
    %v969 = vpack.c.b16 %v785, %v781
    %v970 = vpack.c.b16 %v786, %v782
    %v971 = vpack.c.b16 %v787, %v783
    %v972 = vpack.c.b16 %v788, %v784
    %v973 = vpack.c.b16 %v793, %v789
    %v974 = vpack.c.b16 %v794, %v790
    %v975 = vpack.c.b16 %v795, %v791
    %v976 = vpack.c.b16 %v796, %v792
    %v977 = vpack.c.b16 %v801, %v797
    %v978 = vpack.c.b16 %v802, %v798
    %v979 = vpack.c.b16 %v803, %v799
    %v980 = vpack.c.b16 %v804, %v800
    %v981 = vpack.c.b16 %v809, %v805
    %v982 = vpack.c.b16 %v810, %v806
    %v983 = vpack.c.b16 %v811, %v807
    %v984 = vpack.c.b16 %v812, %v808
    %v985 = vpack.c.b16 %v817, %v813
    %v986 = vpack.c.b16 %v818, %v814
    %v987 = vpack.c.b16 %v819, %v815
    %v988 = vpack.c.b16 %v820, %v816
    %v989 = vpack.c.b16 %v825, %v821
    %v990 = vpack.c.b16 %v826, %v822
    %v991 = vpack.c.b16 %v827, %v823
    %v992 = vpack.c.b16 %v828, %v824
    %v993 = vpack.c.b16 %v833, %v829
    %v994 = vpack.c.b16 %v834, %v830
    %v995 = vpack.c.b16 %v835, %v831
    %v996 = vpack.c.b16 %v836, %v832
    %v997 = vpack.c.b16 %v841, %v837
    %v998 = vpack.c.b16 %v842, %v838
    %v999 = vpack.c.b16 %v843, %v839
    %v1000 = vpack.c.b16 %v844, %v840
    %v1001 = vpack.c.b16 %v849, %v845
    %v1002 = vpack.c.b16 %v850, %v846
    %v1003 = vpack.c.b16 %v851, %v847
    %v1004 = vpack.c.b16 %v852, %v848
    %v1005 = vpack.c.b16 %v857, %v853
    %v1006 = vpack.c.b16 %v858, %v854
    %v1007 = vpack.c.b16 %v859, %v855
    %v1008 = vpack.c.b16 %v860, %v856
    %v1009 = vpack.c.b16 %v865, %v861
    %v1010 = vpack.c.b16 %v866, %v862
    %v1011 = vpack.c.b16 %v867, %v863
    %v1012 = vpack.c.b16 %v868, %v864
    %v1013 = vpack.c.b16 %v873, %v869
    %v1014 = vpack.c.b16 %v874, %v870
    %v1015 = vpack.c.b16 %v875, %v871
    %v1016 = vpack.c.b16 %v876, %v872
    %v1017 = vpack.c.b16 %v881, %v877
    %v1018 = vpack.c.b16 %v882, %v878
    %v1019 = vpack.c.b16 %v883, %v879
    %v1020 = vpack.c.b16 %v884, %v880
    %v1021 = vpack.c.b16 %v889, %v885
    %v1022 = vpack.c.b16 %v890, %v886
    %v1023 = vpack.c.b16 %v891, %v887
    %v1024 = vpack.c.b16 %v892, %v888
    %v1025 = vpack.c.b16 %v897, %v893
    %v1026 = vpack.c.b16 %v898, %v894
    %v1027 = vpack.c.b16 %v899, %v895
    %v1028 = vpack.c.b16 %v900, %v896
    %1157 = vmatpush.bf16.msra.mxu0 %v929
    %1158 = vmatpush.bf16.msra.mxu0 %v925
    %1159 = vmatpush.bf16.msra.mxu0 %v921
    %1160 = vmatpush.bf16.msra.mxu0 %v917
    %1161 = vmatpush.bf16.msra.mxu0 %v913
    %1162 = vmatpush.bf16.msra.mxu0 %v909
    %1163 = vmatpush.bf16.msra.mxu0 %v905
    %1164 = vmatpush.bf16.msra.mxu0 %v901
    %1165 = vmatmul.bf16.gmra.mxu0 %v375
    %v1166 = vpop.f32.mrf.mxu0
    %v1167 = vadd.f32 %v509, %v1166
    %v1168 = vpop.f32.mrf.mxu0
    %1169 = vdwg.mxu0
    %1170 = vmatpush.bf16.msra.mxu0 %v961
    %1171 = vmatpush.bf16.msra.mxu0 %v957
    %1172 = vmatpush.bf16.msra.mxu0 %v953
    %1173 = vmatpush.bf16.msra.mxu0 %v949
    %1174 = vmatpush.bf16.msra.mxu0 %v945
    %1175 = vmatpush.bf16.msra.mxu0 %v941
    %1176 = vmatpush.bf16.msra.mxu0 %v937
    %1177 = vmatpush.bf16.msra.mxu0 %v933
    %1178 = vmatmul.bf16.gmra.mxu0 %v376
    %v1179 = vpop.f32.mrf.mxu0
    %v1180 = vadd.f32 %v1167, %v1179
    %v1181 = vpop.f32.mrf.mxu0
    %1182 = vdwg.mxu0
    %1183 = vmatpush.bf16.msra.mxu0 %v993
    %1184 = vmatpush.bf16.msra.mxu0 %v989
    %1185 = vmatpush.bf16.msra.mxu0 %v985
    %1186 = vmatpush.bf16.msra.mxu0 %v981
    %1187 = vmatpush.bf16.msra.mxu0 %v977
    %1188 = vmatpush.bf16.msra.mxu0 %v973
    %1189 = vmatpush.bf16.msra.mxu0 %v969
    %1190 = vmatpush.bf16.msra.mxu0 %v965
    %1191 = vmatmul.bf16.gmra.mxu0 %v377
    %v1192 = vpop.f32.mrf.mxu0
    %v1193 = vadd.f32 %v1180, %v1192
    %v1194 = vpop.f32.mrf.mxu0
    %1195 = vdwg.mxu0
    %1196 = vmatpush.bf16.msra.mxu0 %v1025
    %1197 = vmatpush.bf16.msra.mxu0 %v1021
    %1198 = vmatpush.bf16.msra.mxu0 %v1017
    %1199 = vmatpush.bf16.msra.mxu0 %v1013
    %1200 = vmatpush.bf16.msra.mxu0 %v1009
    %1201 = vmatpush.bf16.msra.mxu0 %v1005
    %1202 = vmatpush.bf16.msra.mxu0 %v1001
    %1203 = vmatpush.bf16.msra.mxu0 %v997
    %1204 = vmatmul.bf16.gmra.mxu0 %v378
    %v1205 = vpop.f32.mrf.mxu0
    %v1206 = vadd.f32 %v1193, %v1205
    %v1207 = vpop.f32.mrf.mxu0
    %1208 = vdwg.mxu0
    %1209 = vmatpush.bf16.msra.mxu0 %v930
    %1210 = vmatpush.bf16.msra.mxu0 %v926
    %1211 = vmatpush.bf16.msra.mxu0 %v922
    %1212 = vmatpush.bf16.msra.mxu0 %v918
    %1213 = vmatpush.bf16.msra.mxu0 %v914
    %1214 = vmatpush.bf16.msra.mxu0 %v910
    %1215 = vmatpush.bf16.msra.mxu0 %v906
    %1216 = vmatpush.bf16.msra.mxu0 %v902
    %1217 = vmatmul.bf16.gmra.mxu0 %v375
    %v1218 = vpop.f32.mrf.mxu0
    %v1219 = vadd.f32 %v510, %v1218
    %v1220 = vpop.f32.mrf.mxu0
    %1221 = vdwg.mxu0
    %1222 = vmatpush.bf16.msra.mxu0 %v962
    %1223 = vmatpush.bf16.msra.mxu0 %v958
    %1224 = vmatpush.bf16.msra.mxu0 %v954
    %1225 = vmatpush.bf16.msra.mxu0 %v950
    %1226 = vmatpush.bf16.msra.mxu0 %v946
    %1227 = vmatpush.bf16.msra.mxu0 %v942
    %1228 = vmatpush.bf16.msra.mxu0 %v938
    %1229 = vmatpush.bf16.msra.mxu0 %v934
    %1230 = vmatmul.bf16.gmra.mxu0 %v376
    %v1231 = vpop.f32.mrf.mxu0
    %v1232 = vadd.f32 %v1219, %v1231
    %v1233 = vpop.f32.mrf.mxu0
    %1234 = vdwg.mxu0
    %1235 = vmatpush.bf16.msra.mxu0 %v994
    %1236 = vmatpush.bf16.msra.mxu0 %v990
    %1237 = vmatpush.bf16.msra.mxu0 %v986
    %1238 = vmatpush.bf16.msra.mxu0 %v982
    %1239 = vmatpush.bf16.msra.mxu0 %v978
    %1240 = vmatpush.bf16.msra.mxu0 %v974
    %1241 = vmatpush.bf16.msra.mxu0 %v970
    %1242 = vmatpush.bf16.msra.mxu0 %v966
    %1243 = vmatmul.bf16.gmra.mxu0 %v377
    %v1244 = vpop.f32.mrf.mxu0
    %v1245 = vadd.f32 %v1232, %v1244
    %v1246 = vpop.f32.mrf.mxu0
    %1247 = vdwg.mxu0
    %1248 = vmatpush.bf16.msra.mxu0 %v1026
    %1249 = vmatpush.bf16.msra.mxu0 %v1022
    %1250 = vmatpush.bf16.msra.mxu0 %v1018
    %1251 = vmatpush.bf16.msra.mxu0 %v1014
    %1252 = vmatpush.bf16.msra.mxu0 %v1010
    %1253 = vmatpush.bf16.msra.mxu0 %v1006
    %1254 = vmatpush.bf16.msra.mxu0 %v1002
    %1255 = vmatpush.bf16.msra.mxu0 %v998
    %1256 = vmatmul.bf16.gmra.mxu0 %v378
    %v1257 = vpop.f32.mrf.mxu0
    %v1258 = vadd.f32 %v1245, %v1257
    %v1259 = vpop.f32.mrf.mxu0
    %1260 = vdwg.mxu0
    %1261 = vmatpush.bf16.msra.mxu0 %v931
    %1262 = vmatpush.bf16.msra.mxu0 %v927
    %1263 = vmatpush.bf16.msra.mxu0 %v923
    %1264 = vmatpush.bf16.msra.mxu0 %v919
    %1265 = vmatpush.bf16.msra.mxu0 %v915
    %1266 = vmatpush.bf16.msra.mxu0 %v911
    %1267 = vmatpush.bf16.msra.mxu0 %v907
    %1268 = vmatpush.bf16.msra.mxu0 %v903
    %1269 = vmatmul.bf16.gmra.mxu0 %v375
    %v1270 = vpop.f32.mrf.mxu0
    %v1271 = vadd.f32 %v511, %v1270
    %v1272 = vpop.f32.mrf.mxu0
    %1273 = vdwg.mxu0
    %1274 = vmatpush.bf16.msra.mxu0 %v963
    %1275 = vmatpush.bf16.msra.mxu0 %v959
    %1276 = vmatpush.bf16.msra.mxu0 %v955
    %1277 = vmatpush.bf16.msra.mxu0 %v951
    %1278 = vmatpush.bf16.msra.mxu0 %v947
    %1279 = vmatpush.bf16.msra.mxu0 %v943
    %1280 = vmatpush.bf16.msra.mxu0 %v939
    %1281 = vmatpush.bf16.msra.mxu0 %v935
    %1282 = vmatmul.bf16.gmra.mxu0 %v376
    %v1283 = vpop.f32.mrf.mxu0
    %v1284 = vadd.f32 %v1271, %v1283
    %v1285 = vpop.f32.mrf.mxu0
    %1286 = vdwg.mxu0
    %1287 = vmatpush.bf16.msra.mxu0 %v995
    %1288 = vmatpush.bf16.msra.mxu0 %v991
    %1289 = vmatpush.bf16.msra.mxu0 %v987
    %1290 = vmatpush.bf16.msra.mxu0 %v983
    %1291 = vmatpush.bf16.msra.mxu0 %v979
    %1292 = vmatpush.bf16.msra.mxu0 %v975
    %1293 = vmatpush.bf16.msra.mxu0 %v971
    %1294 = vmatpush.bf16.msra.mxu0 %v967
    %1295 = vmatmul.bf16.gmra.mxu0 %v377
    %v1296 = vpop.f32.mrf.mxu0
    %v1297 = vadd.f32 %v1284, %v1296
    %v1298 = vpop.f32.mrf.mxu0
    %1299 = vdwg.mxu0
    %1300 = vmatpush.bf16.msra.mxu0 %v1027
    %1301 = vmatpush.bf16.msra.mxu0 %v1023
    %1302 = vmatpush.bf16.msra.mxu0 %v1019
    %1303 = vmatpush.bf16.msra.mxu0 %v1015
    %1304 = vmatpush.bf16.msra.mxu0 %v1011
    %1305 = vmatpush.bf16.msra.mxu0 %v1007
    %1306 = vmatpush.bf16.msra.mxu0 %v1003
    %1307 = vmatpush.bf16.msra.mxu0 %v999
    %1308 = vmatmul.bf16.gmra.mxu0 %v378
    %v1309 = vpop.f32.mrf.mxu0
    %v1310 = vadd.f32 %v1297, %v1309
    %v1311 = vpop.f32.mrf.mxu0
    %1312 = vdwg.mxu0
    %1313 = vmatpush.bf16.msra.mxu0 %v932
    %1314 = vmatpush.bf16.msra.mxu0 %v928
    %1315 = vmatpush.bf16.msra.mxu0 %v924
    %1316 = vmatpush.bf16.msra.mxu0 %v920
    %1317 = vmatpush.bf16.msra.mxu0 %v916
    %1318 = vmatpush.bf16.msra.mxu0 %v912
    %1319 = vmatpush.bf16.msra.mxu0 %v908
    %1320 = vmatpush.bf16.msra.mxu0 %v904
    %1321 = vmatmul.bf16.gmra.mxu0 %v375
    %v1322 = vpop.f32.mrf.mxu0
    %v1323 = vadd.f32 %v512, %v1322
    %v1324 = vpop.f32.mrf.mxu0
    %1325 = vdwg.mxu0
    %1326 = vmatpush.bf16.msra.mxu0 %v964
    %1327 = vmatpush.bf16.msra.mxu0 %v960
    %1328 = vmatpush.bf16.msra.mxu0 %v956
    %1329 = vmatpush.bf16.msra.mxu0 %v952
    %1330 = vmatpush.bf16.msra.mxu0 %v948
    %1331 = vmatpush.bf16.msra.mxu0 %v944
    %1332 = vmatpush.bf16.msra.mxu0 %v940
    %1333 = vmatpush.bf16.msra.mxu0 %v936
    %1334 = vmatmul.bf16.gmra.mxu0 %v376
    %v1335 = vpop.f32.mrf.mxu0
    %v1336 = vadd.f32 %v1323, %v1335
    %v1337 = vpop.f32.mrf.mxu0
    %1338 = vdwg.mxu0
    %1339 = vmatpush.bf16.msra.mxu0 %v996
    %1340 = vmatpush.bf16.msra.mxu0 %v992
    %1341 = vmatpush.bf16.msra.mxu0 %v988
    %1342 = vmatpush.bf16.msra.mxu0 %v984
    %1343 = vmatpush.bf16.msra.mxu0 %v980
    %1344 = vmatpush.bf16.msra.mxu0 %v976
    %1345 = vmatpush.bf16.msra.mxu0 %v972
    %1346 = vmatpush.bf16.msra.mxu0 %v968
    %1347 = vmatmul.bf16.gmra.mxu0 %v377
    %v1348 = vpop.f32.mrf.mxu0
    %v1349 = vadd.f32 %v1336, %v1348
    %v1350 = vpop.f32.mrf.mxu0
    %1351 = vdwg.mxu0
    %1352 = vmatpush.bf16.msra.mxu0 %v1028
    %1353 = vmatpush.bf16.msra.mxu0 %v1024
    %1354 = vmatpush.bf16.msra.mxu0 %v1020
    %1355 = vmatpush.bf16.msra.mxu0 %v1016
    %1356 = vmatpush.bf16.msra.mxu0 %v1012
    %1357 = vmatpush.bf16.msra.mxu0 %v1008
    %1358 = vmatpush.bf16.msra.mxu0 %v1004
    %1359 = vmatpush.bf16.msra.mxu0 %v1000
    %1360 = vmatmul.bf16.gmra.mxu0 %v378
    %v1361 = vpop.f32.mrf.mxu0
    %v1362 = vadd.f32 %v1349, %v1361
    %v1363 = vpop.f32.mrf.mxu0
    %1364 = vdwg.mxu0
    %v1365 = vmax.f32 %v1206, 0.0
    %v1366 = vmax.f32 %v1258, 0.0
    %v1367 = vmax.f32 %v1310, 0.0
    %v1368 = vmax.f32 %v1362, 0.0
    %v1369 = vpack.c.bf16 %v1365, %v1365
    %v1370 = vpack.c.bf16 %v1366, %v1366
    %v1371 = vpack.c.bf16 %v1367, %v1367
    %v1372 = vpack.c.bf16 %v1368, %v1368
    %v1373 = vld [vmem:[#allocation11] sm:$0xf]
    %v1374 = vld [vmem:[#allocation11 + $0x4] sm:$0xf]
    %v1375 = vld [vmem:[#allocation11 + $0x8] sm:$0xf]
    %v1376 = vld [vmem:[#allocation11 + $0xc] sm:$0xf]
    %v1377 = vld [vmem:[#allocation11 + $0x10] sm:$0xf]
    %v1378 = vld [vmem:[#allocation11 + $0x14] sm:$0xf]
    %v1379 = vld [vmem:[#allocation11 + $0x18] sm:$0xf]
    %v1380 = vld [vmem:[#allocation11 + $0x1c] sm:$0xf]
    %v1381 = vld [vmem:[#allocation11 + $0x20] sm:$0xf]
    %v1382 = vld [vmem:[#allocation11 + $0x24] sm:$0xf]
    %v1383 = vld [vmem:[#allocation11 + $0x28] sm:$0xf]
    %v1384 = vld [vmem:[#allocation11 + $0x2c] sm:$0xf]
    %v1385 = vld [vmem:[#allocation11 + $0x30] sm:$0xf]
    %v1386 = vld [vmem:[#allocation11 + $0x34] sm:$0xf]
    %v1387 = vld [vmem:[#allocation11 + $0x38] sm:$0xf]
    %v1388 = vld [vmem:[#allocation11 + $0x3c] sm:$0xf]
    %v1389 = vld [vmem:[#allocation11 + $0x40] sm:$0xf]
    %v1390 = vld [vmem:[#allocation11 + $0x44] sm:$0xf]
    %v1391 = vld [vmem:[#allocation11 + $0x48] sm:$0xf]
    %v1392 = vld [vmem:[#allocation11 + $0x4c] sm:$0xf]
    %v1393 = vld [vmem:[#allocation11 + $0x50] sm:$0xf]
    %v1394 = vld [vmem:[#allocation11 + $0x54] sm:$0xf]
    %v1395 = vld [vmem:[#allocation11 + $0x58] sm:$0xf]
    %v1396 = vld [vmem:[#allocation11 + $0x5c] sm:$0xf]
    %v1397 = vld [vmem:[#allocation11 + $0x60] sm:$0xf]
    %v1398 = vld [vmem:[#allocation11 + $0x64] sm:$0xf]
    %v1399 = vld [vmem:[#allocation11 + $0x68] sm:$0xf]
    %v1400 = vld [vmem:[#allocation11 + $0x6c] sm:$0xf]
    %v1401 = vld [vmem:[#allocation11 + $0x70] sm:$0xf]
    %v1402 = vld [vmem:[#allocation11 + $0x74] sm:$0xf]
    %v1403 = vld [vmem:[#allocation11 + $0x78] sm:$0xf]
    %v1404 = vld [vmem:[#allocation11 + $0x7c] sm:$0xf]
    %v1405 = vld [vmem:[#allocation11 + $0x80] sm:$0xf]
    %v1406 = vld [vmem:[#allocation11 + $0x84] sm:$0xf]
    %v1407 = vld [vmem:[#allocation11 + $0x88] sm:$0xf]
    %v1408 = vld [vmem:[#allocation11 + $0x8c] sm:$0xf]
    %v1409 = vld [vmem:[#allocation11 + $0x90] sm:$0xf]
    %v1410 = vld [vmem:[#allocation11 + $0x94] sm:$0xf]
    %v1411 = vld [vmem:[#allocation11 + $0x98] sm:$0xf]
    %v1412 = vld [vmem:[#allocation11 + $0x9c] sm:$0xf]
    %v1413 = vld [vmem:[#allocation11 + $0xa0] sm:$0xf]
    %v1414 = vld [vmem:[#allocation11 + $0xa4] sm:$0xf]
    %v1415 = vld [vmem:[#allocation11 + $0xa8] sm:$0xf]
    %v1416 = vld [vmem:[#allocation11 + $0xac] sm:$0xf]
    %v1417 = vld [vmem:[#allocation11 + $0xb0] sm:$0xf]
    %v1418 = vld [vmem:[#allocation11 + $0xb4] sm:$0xf]
    %v1419 = vld [vmem:[#allocation11 + $0xb8] sm:$0xf]
    %v1420 = vld [vmem:[#allocation11 + $0xbc] sm:$0xf]
    %v1421 = vld [vmem:[#allocation11 + $0xc0] sm:$0xf]
    %v1422 = vld [vmem:[#allocation11 + $0xc4] sm:$0xf]
    %v1423 = vld [vmem:[#allocation11 + $0xc8] sm:$0xf]
    %v1424 = vld [vmem:[#allocation11 + $0xcc] sm:$0xf]
    %v1425 = vld [vmem:[#allocation11 + $0xd0] sm:$0xf]
    %v1426 = vld [vmem:[#allocation11 + $0xd4] sm:$0xf]
    %v1427 = vld [vmem:[#allocation11 + $0xd8] sm:$0xf]
    %v1428 = vld [vmem:[#allocation11 + $0xdc] sm:$0xf]
    %v1429 = vld [vmem:[#allocation11 + $0xe0] sm:$0xf]
    %v1430 = vld [vmem:[#allocation11 + $0xe4] sm:$0xf]
    %v1431 = vld [vmem:[#allocation11 + $0xe8] sm:$0xf]
    %v1432 = vld [vmem:[#allocation11 + $0xec] sm:$0xf]
    %v1433 = vld [vmem:[#allocation11 + $0xf0] sm:$0xf]
    %v1434 = vld [vmem:[#allocation11 + $0xf4] sm:$0xf]
    %v1435 = vld [vmem:[#allocation11 + $0xf8] sm:$0xf]
    %v1436 = vld [vmem:[#allocation11 + $0xfc] sm:$0xf]
    %v1437 = vld [vmem:[%s6] sm:$0x1]
    %v1439 = vperm.slane %v1437, 0
    %v1505 = vunpack.c.l.b16 %v1373
    %v1506 = vunpack.c.l.b16 %v1374
    %v1507 = vunpack.c.l.b16 %v1375
    %v1508 = vunpack.c.l.b16 %v1376
    %v1509 = vunpack.c.l.b16 %v1377
    %v1510 = vunpack.c.l.b16 %v1378
    %v1511 = vunpack.c.l.b16 %v1379
    %v1512 = vunpack.c.l.b16 %v1380
    %v1513 = vunpack.c.l.b16 %v1381
    %v1514 = vunpack.c.l.b16 %v1382
    %v1515 = vunpack.c.l.b16 %v1383
    %v1516 = vunpack.c.l.b16 %v1384
    %v1517 = vunpack.c.l.b16 %v1385
    %v1518 = vunpack.c.l.b16 %v1386
    %v1519 = vunpack.c.l.b16 %v1387
    %v1520 = vunpack.c.l.b16 %v1388
    %v1521 = vunpack.c.l.b16 %v1389
    %v1522 = vunpack.c.l.b16 %v1390
    %v1523 = vunpack.c.l.b16 %v1391
    %v1524 = vunpack.c.l.b16 %v1392
    %v1525 = vunpack.c.l.b16 %v1393
    %v1526 = vunpack.c.l.b16 %v1394
    %v1527 = vunpack.c.l.b16 %v1395
    %v1528 = vunpack.c.l.b16 %v1396
    %v1529 = vunpack.c.l.b16 %v1397
    %v1530 = vunpack.c.l.b16 %v1398
    %v1531 = vunpack.c.l.b16 %v1399
    %v1532 = vunpack.c.l.b16 %v1400
    %v1533 = vunpack.c.l.b16 %v1401
    %v1534 = vunpack.c.l.b16 %v1402
    %v1535 = vunpack.c.l.b16 %v1403
    %v1536 = vunpack.c.l.b16 %v1404
    %v1537 = vunpack.c.l.b16 %v1405
    %v1538 = vunpack.c.l.b16 %v1406
    %v1539 = vunpack.c.l.b16 %v1407
    %v1540 = vunpack.c.l.b16 %v1408
    %v1541 = vunpack.c.l.b16 %v1409
    %v1542 = vunpack.c.l.b16 %v1410
    %v1543 = vunpack.c.l.b16 %v1411
    %v1544 = vunpack.c.l.b16 %v1412
    %v1545 = vunpack.c.l.b16 %v1413
    %v1546 = vunpack.c.l.b16 %v1414
    %v1547 = vunpack.c.l.b16 %v1415
    %v1548 = vunpack.c.l.b16 %v1416
    %v1549 = vunpack.c.l.b16 %v1417
    %v1550 = vunpack.c.l.b16 %v1418
    %v1551 = vunpack.c.l.b16 %v1419
    %v1552 = vunpack.c.l.b16 %v1420
    %v1553 = vunpack.c.l.b16 %v1421
    %v1554 = vunpack.c.l.b16 %v1422
    %v1555 = vunpack.c.l.b16 %v1423
    %v1556 = vunpack.c.l.b16 %v1424
    %v1557 = vunpack.c.l.b16 %v1425
    %v1558 = vunpack.c.l.b16 %v1426
    %v1559 = vunpack.c.l.b16 %v1427
    %v1560 = vunpack.c.l.b16 %v1428
    %v1561 = vunpack.c.l.b16 %v1429
    %v1562 = vunpack.c.l.b16 %v1430
    %v1563 = vunpack.c.l.b16 %v1431
    %v1564 = vunpack.c.l.b16 %v1432
    %v1565 = vunpack.c.l.b16 %v1433
    %v1566 = vunpack.c.l.b16 %v1434
    %v1567 = vunpack.c.l.b16 %v1435
    %v1568 = vunpack.c.l.b16 %v1436
    %v1569 = vpack.c.b16 %v1506, %v1505
    %v1570 = vpack.c.b16 %v1508, %v1507
    %v1571 = vpack.c.b16 %v1510, %v1509
    %v1572 = vpack.c.b16 %v1512, %v1511
    %v1573 = vpack.c.b16 %v1514, %v1513
    %v1574 = vpack.c.b16 %v1516, %v1515
    %v1575 = vpack.c.b16 %v1518, %v1517
    %v1576 = vpack.c.b16 %v1520, %v1519
    %v1577 = vpack.c.b16 %v1522, %v1521
    %v1578 = vpack.c.b16 %v1524, %v1523
    %v1579 = vpack.c.b16 %v1526, %v1525
    %v1580 = vpack.c.b16 %v1528, %v1527
    %v1581 = vpack.c.b16 %v1530, %v1529
    %v1582 = vpack.c.b16 %v1532, %v1531
    %v1583 = vpack.c.b16 %v1534, %v1533
    %v1584 = vpack.c.b16 %v1536, %v1535
    %v1585 = vpack.c.b16 %v1538, %v1537
    %v1586 = vpack.c.b16 %v1540, %v1539
    %v1587 = vpack.c.b16 %v1542, %v1541
    %v1588 = vpack.c.b16 %v1544, %v1543
    %v1589 = vpack.c.b16 %v1546, %v1545
    %v1590 = vpack.c.b16 %v1548, %v1547
    %v1591 = vpack.c.b16 %v1550, %v1549
    %v1592 = vpack.c.b16 %v1552, %v1551
    %v1593 = vpack.c.b16 %v1554, %v1553
    %v1594 = vpack.c.b16 %v1556, %v1555
    %v1595 = vpack.c.b16 %v1558, %v1557
    %v1596 = vpack.c.b16 %v1560, %v1559
    %v1597 = vpack.c.b16 %v1562, %v1561
    %v1598 = vpack.c.b16 %v1564, %v1563
    %v1599 = vpack.c.b16 %v1566, %v1565
    %v1600 = vpack.c.b16 %v1568, %v1567
    %1633 = vmatpush.bf16.msra.mxu0 %v1576
    %1634 = vmatpush.bf16.msra.mxu0 %v1575
    %1635 = vmatpush.bf16.msra.mxu0 %v1574
    %1636 = vmatpush.bf16.msra.mxu0 %v1573
    %1637 = vmatpush.bf16.msra.mxu0 %v1572
    %1638 = vmatpush.bf16.msra.mxu0 %v1571
    %1639 = vmatpush.bf16.msra.mxu0 %v1570
    %1640 = vmatpush.bf16.msra.mxu0 %v1569
    %1641 = vmatmul.bf16.gmra.mxu0 %v1369
    %v1642 = vpop.f32.mrf.mxu0
    %v1643 = vadd.f32 %v1439, %v1642
    %v1644 = vpop.f32.mrf.mxu0
    %1645 = vdwg.mxu0
    %1646 = vmatpush.bf16.msra.mxu0 %v1584
    %1647 = vmatpush.bf16.msra.mxu0 %v1583
    %1648 = vmatpush.bf16.msra.mxu0 %v1582
    %1649 = vmatpush.bf16.msra.mxu0 %v1581
    %1650 = vmatpush.bf16.msra.mxu0 %v1580
    %1651 = vmatpush.bf16.msra.mxu0 %v1579
    %1652 = vmatpush.bf16.msra.mxu0 %v1578
    %1653 = vmatpush.bf16.msra.mxu0 %v1577
    %1654 = vmatmul.bf16.gmra.mxu0 %v1370
    %v1655 = vpop.f32.mrf.mxu0
    %v1656 = vadd.f32 %v1643, %v1655
    %v1657 = vpop.f32.mrf.mxu0
    %1658 = vdwg.mxu0
    %1659 = vmatpush.bf16.msra.mxu0 %v1592
    %1660 = vmatpush.bf16.msra.mxu0 %v1591
    %1661 = vmatpush.bf16.msra.mxu0 %v1590
    %1662 = vmatpush.bf16.msra.mxu0 %v1589
    %1663 = vmatpush.bf16.msra.mxu0 %v1588
    %1664 = vmatpush.bf16.msra.mxu0 %v1587
    %1665 = vmatpush.bf16.msra.mxu0 %v1586
    %1666 = vmatpush.bf16.msra.mxu0 %v1585
    %1667 = vmatmul.bf16.gmra.mxu0 %v1371
    %v1668 = vpop.f32.mrf.mxu0
    %v1669 = vadd.f32 %v1656, %v1668
    %v1670 = vpop.f32.mrf.mxu0
    %1671 = vdwg.mxu0
    %1672 = vmatpush.bf16.msra.mxu0 %v1600
    %1673 = vmatpush.bf16.msra.mxu0 %v1599
    %1674 = vmatpush.bf16.msra.mxu0 %v1598
    %1675 = vmatpush.bf16.msra.mxu0 %v1597
    %1676 = vmatpush.bf16.msra.mxu0 %v1596
    %1677 = vmatpush.bf16.msra.mxu0 %v1595
    %1678 = vmatpush.bf16.msra.mxu0 %v1594
    %1679 = vmatpush.bf16.msra.mxu0 %v1593
    %1680 = vmatmul.bf16.gmra.mxu0 %v1372
    %v1681 = vpop.f32.mrf.mxu0
    %v1682 = vadd.f32 %v1669, %v1681
    %v1683 = vpop.f32.mrf.mxu0
    %1684 = vdwg.mxu0
    %1685 = vst [vmem:[#allocation13] sm:$0xff] %v1682
    // Predicated region
    $region54: #{tpu_custom_call.1} parent=1 // pred_check
      _
    $region55: #{tpu_custom_call.1} parent=1 // pred_check_branch
      %1687 = sbr.rel (0) target = $region57
    $region56: #{tpu_custom_call.1} parent=1 // pred_region
      %1689 = vsyncadd [#allocation4], 0
      %s1691 = sshll.u32 [#allocation13], 4
      %s1692 = int_to_ptr.vmem [resolvable:$true] %s1691
      %s1693 = sshll.u32 %s7, 4
      %s1694 = int_to_ptr.hbm [resolvable:$true] %s1693
      %1696 = dma.vmem_to_hbm [thread:$0]  %s1692, 128, %s1694, [#allocation4]
    $region57: #{tpu_custom_call.1} parent=1 // pred_fallthru
      _
    // Predicated region
    $region58: #{tpu_custom_call.1} parent=1 // pred_check
      _
    $region59: #{tpu_custom_call.1} parent=1 // pred_check_branch
      %1698 = sbr.rel (0) target = $region61
    $region60: #{tpu_custom_call.1} parent=1 // pred_region
      %1700 = dma.done [#allocation4], 128
    $region61: #{tpu_custom_call.1} parent=1 // pred_fallthru
      _
    %1701 = vsyncpa [#allocation3], 1
    %1702 = vsyncpa [#allocation6], 1
    %1703 = vsyncpa [#allocation9], 1
    %1704 = vsyncpa [#allocation12], 1
    %1705 = vsyncpa [#allocation4], 1

</llo_original>
